<compile_context>
chip_gen: v6e
topology: v6e:2x2x1
jax: 0.10.0
libtpu: 0.0.40
codegen_flags: <defaults>
</compile_context>

<pallas_src>
import functools

import jax
import jax.numpy as jnp
from jax.experimental import pallas as pl
from jax.experimental.pallas import tpu as pltpu


def cbow_mlp_kernel(x_ref, w1_ref, b1_ref, w2_ref, b2_ref, out_ref, h_ref,
                    *, cache_hidden):
    """x: (block_b, 2C*E) bf16, w1: (2C*E, H) bf16, w2: (H, block_v) bf16."""
    if cache_hidden:
        # ---- Stage 1: first Linear + ReLU, once per batch tile -------------
        @pl.when(pl.program_id(1) == 0)
        def _():
            h = jnp.dot(x_ref[...], w1_ref[...],
                        preferred_element_type=jnp.float32)     # MXU, f32 acc
            h = jnp.maximum(h + b1_ref[...], 0.0)               # bias+ReLU f32
            h_ref[...] = h.astype(jnp.bfloat16)                 # cache bf16 once
        h = h_ref[...]
    else:
        # Single batch tile: recompute the cheap hidden per vocab tile so the
        # vocab axis can be "parallel" (keeps v7x's 2nd TensorCore busy).
        h = jnp.dot(x_ref[...], w1_ref[...], preferred_element_type=jnp.float32)
        h = jnp.maximum(h + b1_ref[...], 0.0).astype(jnp.bfloat16)

    # ---- Stage 2: second Linear for this lane-dense vocab tile -------------
    logits = jnp.dot(h, w2_ref[...], preferred_element_type=jnp.float32)
    out_ref[...] = (logits + b2_ref[...]).astype(out_ref.dtype)


def cbow_forward(inputs, emb, w1, b1, w2, b2, *, block_b=128, block_v=512,
                 out_dtype=jnp.float32):
    B, two_c = inputs.shape
    V, E = emb.shape
    D_in, H = w1.shape
    assert D_in == two_c * E

    # Embedding gather hoisted to the wrapper (XLA gather).  Clip once here
    # (jnp.take clamp semantics) instead of per scalar index in the kernel.
    idx = jnp.clip(inputs.astype(jnp.int32), 0, V - 1)
    embedded = jnp.take(emb, idx.reshape(-1), axis=0).reshape(B, D_in)
    embedded = embedded.astype(jnp.bfloat16)       # bf16 MXU operand, f32 acc
    # TODO(synk): an in-kernel gather (scalar prefetch + per-context matmul
    # accumulation) is possible if fusing the lookup ever matters; hoisting it
    # was the review's preferred fix for the scalar/XLU-bound stage 1.

    # Tile sizes: batch a multiple of 8 (sublanes), vocab a multiple of 128
    # (lanes, unmasked vst).  Clamp to the padded extents for toy shapes.
    B8 = pl.cdiv(B, 8) * 8
    block_b = min(block_b, B8)
    B_pad = pl.cdiv(B, block_b) * block_b
    V128 = pl.cdiv(V, 128) * 128
    block_v = min(block_v, V128)
    V_pad = pl.cdiv(V, block_v) * block_v

    embedded_p = jnp.zeros((B_pad, D_in), jnp.bfloat16).at[:B].set(embedded)
    w2_p = jnp.zeros((H, V_pad), w2.dtype).at[:, :V].set(w2)
    b2_p = jnp.zeros((1, V_pad), b2.dtype).at[:, :V].set(b2)
    w1_bf = w1.astype(jnp.bfloat16)
    w2_bf = w2_p.astype(jnp.bfloat16)
    # TODO(synk): on v5e/v6e w2 could be int8 with a per-column scale (native
    # int MXU) to halve the streamed weight bytes; v7x dropped integer MXU.

    n_batch_tiles = B_pad // block_b
    n_vocab_tiles = V_pad // block_v
    grid = (n_batch_tiles, n_vocab_tiles)

    # Cache the hidden activation across vocab tiles unless that would leave
    # a single-tile "parallel" axis (v7x megacore) with work left to split.
    cache_hidden = n_batch_tiles > 1 or n_vocab_tiles == 1
    dims = ("parallel", "arbitrary") if cache_hidden else ("parallel", "parallel")
    kernel = functools.partial(cbow_mlp_kernel, cache_hidden=cache_hidden)

    flops = 2 * B_pad * D_in * H + 2 * B_pad * H * V_pad
    out_itemsize = jnp.dtype(out_dtype).itemsize
    bytes_accessed = (embedded_p.size * 2 + w1_bf.size * 2 + b1.size * 4
                      + n_batch_tiles * (w2_bf.size * 2 + b2_p.size * 4)
                      + B_pad * V_pad * out_itemsize)

    out = pl.pallas_call(
        kernel,
        out_shape=jax.ShapeDtypeStruct((B_pad, V_pad), out_dtype),
        grid_spec=pltpu.PrefetchScalarGridSpec(
            num_scalar_prefetch=0,
            grid=grid,
            in_specs=[
                pl.BlockSpec((block_b, D_in), lambda i, j: (i, 0)),   # embedded
                pl.BlockSpec((D_in, H), lambda i, j: (0, 0)),         # w1 (resident)
                pl.BlockSpec((1, H), lambda i, j: (0, 0)),            # b1 (resident)
                pl.BlockSpec((H, block_v), lambda i, j: (0, j)),      # w2 (streamed)
                pl.BlockSpec((1, block_v), lambda i, j: (0, j)),      # b2 (streamed)
            ],
            out_specs=pl.BlockSpec((block_b, block_v), lambda i, j: (i, j)),
            scratch_shapes=[pltpu.VMEM((block_b, H), jnp.bfloat16)],  # hidden act
        ),
        compiler_params=pltpu.CompilerParams(
            dimension_semantics=dims,
            vmem_limit_bytes=32 * 1024 * 1024,     # headroom on v7x 64 MiB VMEM
        ),
        cost_estimate=pl.CostEstimate(flops=flops, transcendentals=0,
                                      bytes_accessed=bytes_accessed),
    )(embedded_p, w1_bf, b1, w2_bf, b2_p)

    return out[:B, :V]


def cbow_reference(inputs, emb, w1, b1, w2, b2):
    B = inputs.shape[0]
    embedded = jnp.take(emb, inputs, axis=0).reshape(B, -1)
    h = jnp.maximum(embedded @ w1 + b1, 0.0)
    return h @ w2 + b2


if __name__ == "__main__":
    vocab_size = 64
    embedding_size = 32
    context_size = 4          # context words on each side -> 2*C total
    batch = 8
    two_c = 2 * context_size
    d_in = two_c * embedding_size
    hidden = 128

    key = jax.random.PRNGKey(0)
    k_in, k_emb, k_w1, k_b1, k_w2, k_b2 = jax.random.split(key, 6)

    inputs = jax.random.randint(k_in, (batch, two_c), 0, vocab_size,
                                dtype=jnp.int32)
    emb = jax.random.normal(k_emb, (vocab_size, embedding_size), dtype=jnp.float32)
    w1 = jax.random.normal(k_w1, (d_in, hidden), dtype=jnp.float32) * 0.05
    b1 = jax.random.normal(k_b1, (1, hidden), dtype=jnp.float32) * 0.05
    w2 = jax.random.normal(k_w2, (hidden, vocab_size), dtype=jnp.float32) * 0.05
    b2 = jax.random.normal(k_b2, (1, vocab_size), dtype=jnp.float32) * 0.05

    out = cbow_forward(inputs, emb, w1, b1, w2, b2)
    out = jax.block_until_ready(out)

    ref = cbow_reference(inputs, emb, w1, b1, w2, b2)
    assert out.shape == (batch, vocab_size)
    # bf16 operands + f32 accumulation -> loose tolerance vs pure-f32 reference.
    assert jnp.allclose(out, ref, atol=5e-2, rtol=5e-2), "mismatch vs reference"

    print("KERNEL_OK")
</pallas_src>

<mosaic_0001>
module attributes {stable_mosaic.version = 11 : i64} {
  func.func @cbow_mlp_kernel(%arg0: i32, %arg1: i32, %arg2: memref<8x256xbf16, #tpu.memory_space<vmem>>, %arg3: memref<256x128xbf16, #tpu.memory_space<vmem>>, %arg4: memref<1x128xf32, #tpu.memory_space<vmem>>, %arg5: memref<128x128xbf16, #tpu.memory_space<vmem>>, %arg6: memref<1x128xf32, #tpu.memory_space<vmem>>, %arg7: memref<8x128xf32, #tpu.memory_space<vmem>>, %arg8: memref<8x128xbf16, #tpu.memory_space<vmem>>) attributes {dimension_semantics = [#tpu.dimension_semantics<parallel>, #tpu.dimension_semantics<arbitrary>], iteration_bounds = array<i64: 1, 1>, scalar_prefetch = 0 : i64, scratch_operands = 1 : i64, tpu.core_type = #tpu.core_type<tc>, window_params = [{transform_indices = @transform_0, window_bounds = array<i64: 8, 256>}, {pipeline_mode = #tpu.pipeline_mode<synchronous>, transform_indices = @transform_1, window_bounds = array<i64: 256, 128>}, {pipeline_mode = #tpu.pipeline_mode<synchronous>, transform_indices = @transform_2, window_bounds = array<i64: 1, 128>}, {transform_indices = @transform_3, window_bounds = array<i64: 128, 128>}, {transform_indices = @transform_4, window_bounds = array<i64: 1, 128>}, {transform_indices = @transform_5, window_bounds = array<i64: 8, 128>}]} {
    %c0_i32 = arith.constant 0 : i32
    %0 = arith.cmpi eq, %arg1, %c0_i32 : i32
    %1 = arith.extui %0 : i1 to i32
    %c0_i32_0 = arith.constant 0 : i32
    %2 = arith.cmpi ne, %1, %c0_i32_0 : i32
    scf.if %2 {
      %c0_8 = arith.constant 0 : index
      %c0_9 = arith.constant 0 : index
      %10 = vector.load %arg2[%c0_8, %c0_9] : memref<8x256xbf16, #tpu.memory_space<vmem>>, vector<8x256xbf16>
      %c0_10 = arith.constant 0 : index
      %c0_11 = arith.constant 0 : index
      %11 = vector.load %arg3[%c0_10, %c0_11] : memref<256x128xbf16, #tpu.memory_space<vmem>>, vector<256x128xbf16>
      %cst_12 = arith.constant dense<0.000000e+00> : vector<8x128xf32>
      %12 = tpu.matmul %10, %11, %cst_12 {dimension_numbers = #tpu.dot_dimension_numbers<[1], [0], [0], [1], [0, 0, 1, 1], [], []>} : vector<8x256xbf16>, vector<256x128xbf16>, vector<8x128xf32> -> vector<8x128xf32>
      %c0_13 = arith.constant 0 : index
      %c0_14 = arith.constant 0 : index
      %13 = vector.load %arg4[%c0_13, %c0_14] : memref<1x128xf32, #tpu.memory_space<vmem>>, vector<1x128xf32>
      %14 = vector.broadcast %13 : vector<1x128xf32> to vector<8x128xf32>
      %15 = arith.addf %12, %14 : vector<8x128xf32>
      %cst_15 = arith.constant 0.000000e+00 : f32
      %16 = vector.broadcast %cst_15 : f32 to vector<8x128xf32>
      %17 = arith.maximumf %15, %16 : vector<8x128xf32>
      %18 = arith.truncf %17 : vector<8x128xf32> to vector<8x128xbf16>
      %c0_16 = arith.constant 0 : index
      %c0_17 = arith.constant 0 : index
      %19 = vector.load %arg8[%c0_16, %c0_17] : memref<8x128xbf16, #tpu.memory_space<vmem>>, vector<8x128xbf16>
      tpu.vector_store %arg8[%c0_16, %c0_17], %18 {strides = array<i32>} : memref<8x128xbf16, #tpu.memory_space<vmem>>, vector<8x128xbf16>,
    } else {
    }
    %c0 = arith.constant 0 : index
    %c0_1 = arith.constant 0 : index
    %3 = vector.load %arg8[%c0, %c0_1] : memref<8x128xbf16, #tpu.memory_space<vmem>>, vector<8x128xbf16>
    %c0_2 = arith.constant 0 : index
    %c0_3 = arith.constant 0 : index
    %4 = vector.load %arg5[%c0_2, %c0_3] : memref<128x128xbf16, #tpu.memory_space<vmem>>, vector<128x128xbf16>
    %cst = arith.constant dense<0.000000e+00> : vector<8x128xf32>
    %5 = tpu.matmul %3, %4, %cst {dimension_numbers = #tpu.dot_dimension_numbers<[1], [0], [0], [1], [0, 0, 1, 1], [], []>} : vector<8x128xbf16>, vector<128x128xbf16>, vector<8x128xf32> -> vector<8x128xf32>
    %c0_4 = arith.constant 0 : index
    %c0_5 = arith.constant 0 : index
    %6 = vector.load %arg6[%c0_4, %c0_5] : memref<1x128xf32, #tpu.memory_space<vmem>>, vector<1x128xf32>
    %7 = vector.broadcast %6 : vector<1x128xf32> to vector<8x128xf32>
    %8 = arith.addf %5, %7 : vector<8x128xf32>
    %c0_6 = arith.constant 0 : index
    %c0_7 = arith.constant 0 : index
    %9 = vector.load %arg7[%c0_6, %c0_7] : memref<8x128xf32, #tpu.memory_space<vmem>>, vector<8x128xf32>
    tpu.vector_store %arg7[%c0_6, %c0_7], %8 {strides = array<i32>} : memref<8x128xf32, #tpu.memory_space<vmem>>, vector<8x128xf32>,
    return
  }
  func.func @transform_0(%arg0: i32, %arg1: i32) -> (i32, i32) {
    %c0_i32 = arith.constant 0 : i32
    %c0_i32_0 = arith.constant 0 : i32
    return %arg0, %c0_i32 : i32, i32
  }
  func.func @transform_1(%arg0: i32, %arg1: i32) -> (i32, i32) {
    %c0_i32 = arith.constant 0 : i32
    %c0_i32_0 = arith.constant 0 : i32
    %c0_i32_1 = arith.constant 0 : i32
    return %c0_i32, %c0_i32_0 : i32, i32
  }
  func.func @transform_2(%arg0: i32, %arg1: i32) -> (i32, i32) {
    %c0_i32 = arith.constant 0 : i32
    %c0_i32_0 = arith.constant 0 : i32
    %c0_i32_1 = arith.constant 0 : i32
    return %c0_i32, %c0_i32_0 : i32, i32
  }
  func.func @transform_3(%arg0: i32, %arg1: i32) -> (i32, i32) {
    %c0_i32 = arith.constant 0 : i32
    %c0_i32_0 = arith.constant 0 : i32
    return %c0_i32, %arg1 : i32, i32
  }
  func.func @transform_4(%arg0: i32, %arg1: i32) -> (i32, i32) {
    %c0_i32 = arith.constant 0 : i32
    %c0_i32_0 = arith.constant 0 : i32
    return %c0_i32, %arg1 : i32, i32
  }
  func.func @transform_5(%arg0: i32, %arg1: i32) -> (i32, i32) {
    %c0_i32 = arith.constant 0 : i32
    return %arg0, %arg1 : i32, i32
  }
}

</mosaic_0001>

<llo_original>
// kernel: tpu_custom_call.1
$region0: #{tpu_custom_call.1}
  #allocation0 [shape = 'u32[]', space=smem, size = 0x4, offset = 0x4, fixed_abs, tag = 'smem constant byte address 0x4 - core index']
  #allocation1 [shape = 'u32[144,128]{1,0:T(1,128)}', space=vmem, size = 0x12000, scoped, tag = 'internal scratch']
  #allocation2 [shape = 'bf16[8,128]{1,0:T(8,128)(2,1)}', space=vmem, size = 0x800, scoped, tag = 'scratch operand']
  %s0 = inlined_call_operand.hbm [shape: bf16[8,256], index: 0, kind: input, shape index: {}]
  %s1 = inlined_call_operand.hbm [shape: bf16[256,128], index: 1, kind: input, shape index: {}]
  %s2 = inlined_call_operand.vmem [shape: f32[1,128], index: 2, kind: input, shape index: {}]
  %s3 = inlined_call_operand.hbm [shape: bf16[128,128], index: 3, kind: input, shape index: {}]
  %s4 = inlined_call_operand.vmem [shape: f32[1,128], index: 4, kind: input, shape index: {}]
  %s5 = inlined_call_operand.hbm [shape: f32[8,128], index: 5, kind: output, shape index: {}]
  %s6 = sld [smem:[#allocation0]]
  $region46: #{tpu_custom_call.1} parent=0
    _
  %s8 = ssub.s32 1, %s6
  %s9 = scalar_select 0, %s8, %s6
  $region1: #{tpu_custom_call.1} parent=0
    #allocation3 [shape = 'u8[4096]{0}', space=vmem, size = 0x1000, scoped, tag = 'input window, operand 0, single buffered']
    #allocation4 [shape = 's32[1]{0}', space=sflag, size = 0x4, scoped, tag = 'scoped memory for tpu_custom_call.1']
    #allocation5 [shape = 's32[1]{0}', space=sflag, size = 0x4, scoped, tag = 'scoped memory for tpu_custom_call.1']
    #allocation6 [shape = 'u8[65536]{0}', space=vmem, size = 0x10000, scoped, tag = 'input window, operand 1, single buffered']
    #allocation7 [shape = 's32[1]{0}', space=sflag, size = 0x4, scoped, tag = 'scoped memory for tpu_custom_call.1']
    #allocation8 [shape = 'u8[32768]{0}', space=vmem, size = 0x8000, scoped, tag = 'input window, operand 3, single buffered']
    #allocation9 [shape = 'u8[4096]{0}', space=vmem, size = 0x1000, scoped, tag = 'output window, operand 0, single buffered']
    %10 = vsyncpa [#allocation4], 0
    %11 = vsyncpa [#allocation7], 0
    %12 = vsyncpa [#allocation5], 0
    // Predicated region
    $region2: #{tpu_custom_call.1} parent=1 // pred_check
      _
    $region3: #{tpu_custom_call.1} parent=1 // pred_check_branch
      %14 = sbr.rel (0) target = $region5
    $region4: #{tpu_custom_call.1} parent=1 // pred_region
      %s16 = ssub.s32 128, 128
      %17 = vsyncadd [#allocation4], %s16
      %s19 = sshll.u32 [#allocation3], 4
      %s20 = int_to_ptr.vmem [resolvable:$true] %s19
      %22 = dma.hbm_to_vmem [thread:$0]  %s0, 128, %s20, [#allocation4]
    $region5: #{tpu_custom_call.1} parent=1 // pred_fallthru
      _
    // Predicated region
    $region6: #{tpu_custom_call.1} parent=1 // pred_check
      _
    $region7: #{tpu_custom_call.1} parent=1 // pred_check_branch
      %24 = sbr.rel (0) target = $region9
    $region8: #{tpu_custom_call.1} parent=1 // pred_region
      %s26 = ssub.s32 2048, 2048
      %27 = vsyncadd [#allocation7], %s26
      %s28 = sshll.u32 [#allocation6], 4
      %s29 = int_to_ptr.vmem [resolvable:$true] %s28
      %34 = dma.hbm_to_vmem [thread:$0]  %s1, 2048, %s29, [#allocation7], 64, 64, 4
    $region9: #{tpu_custom_call.1} parent=1 // pred_fallthru
      _
    // Predicated region
    $region10: #{tpu_custom_call.1} parent=1 // pred_check
      _
    $region11: #{tpu_custom_call.1} parent=1 // pred_check_branch
      %36 = sbr.rel (0) target = $region13
    $region12: #{tpu_custom_call.1} parent=1 // pred_region
      _
    $region13: #{tpu_custom_call.1} parent=1 // pred_fallthru
      _
    // Predicated region
    $region14: #{tpu_custom_call.1} parent=1 // pred_check
      _
    $region15: #{tpu_custom_call.1} parent=1 // pred_check_branch
      %38 = sbr.rel (0) target = $region17
    $region16: #{tpu_custom_call.1} parent=1 // pred_region
      %s40 = ssub.s32 1024, 1024
      %41 = vsyncadd [#allocation7], %s40
      %s42 = sshll.u32 [#allocation8], 4
      %s43 = int_to_ptr.vmem [resolvable:$true] %s42
      %48 = dma.hbm_to_vmem [thread:$0]  %s3, 1024, %s43, [#allocation7], 64, 64, 4
    $region17: #{tpu_custom_call.1} parent=1 // pred_fallthru
      _
    // Predicated region
    $region18: #{tpu_custom_call.1} parent=1 // pred_check
      _
    $region19: #{tpu_custom_call.1} parent=1 // pred_check_branch
      %50 = sbr.rel (0) target = $region21
    $region20: #{tpu_custom_call.1} parent=1 // pred_region
      _
    $region21: #{tpu_custom_call.1} parent=1 // pred_fallthru
      _
    // Predicated region
    $region22: #{tpu_custom_call.1} parent=1 // pred_check
      _
    $region23: #{tpu_custom_call.1} parent=1 // pred_check_branch
      %52 = sbr.rel (0) target = $region25
    $region24: #{tpu_custom_call.1} parent=1 // pred_region
      %53 = dma.done [#allocation4], 128
    $region25: #{tpu_custom_call.1} parent=1 // pred_fallthru
      _
    // Predicated region
    $region26: #{tpu_custom_call.1} parent=1 // pred_check
      _
    $region27: #{tpu_custom_call.1} parent=1 // pred_check_branch
      %55 = sbr.rel (0) target = $region29
    $region28: #{tpu_custom_call.1} parent=1 // pred_region
      %56 = dma.done [#allocation7], 2048
    $region29: #{tpu_custom_call.1} parent=1 // pred_fallthru
      _
    // Predicated region
    $region30: #{tpu_custom_call.1} parent=1 // pred_check
      _
    $region31: #{tpu_custom_call.1} parent=1 // pred_check_branch
      %58 = sbr.rel (0) target = $region33
    $region32: #{tpu_custom_call.1} parent=1 // pred_region
      %59 = dma.done [#allocation7], 1024
    $region33: #{tpu_custom_call.1} parent=1 // pred_fallthru
      _
    %p61 = scmp.eq.s32.totalorder 0, 0
    // Predicated region
    $region34: #{tpu_custom_call.1} parent=1 // pred_check
      %p62 = pneg %p61
    $region35: #{tpu_custom_call.1} parent=1 // pred_check_branch
      %64 = sbr.rel (%p62) target = $region37
    $region36: #{tpu_custom_call.1} parent=1 // pred_region
      %v65 = vld [vmem:[#allocation3] sm:$0xff]
      %v66 = vld [vmem:[#allocation6] sm:$0xf]
      %v67 = vld [vmem:[#allocation6 + $0x4] sm:$0xf]
      %v68 = vld [vmem:[#allocation6 + $0x8] sm:$0xf]
      %v69 = vld [vmem:[#allocation6 + $0xc] sm:$0xf]
      %v70 = vld [vmem:[#allocation6 + $0x10] sm:$0xf]
      %v71 = vld [vmem:[#allocation6 + $0x14] sm:$0xf]
      %v72 = vld [vmem:[#allocation6 + $0x18] sm:$0xf]
      %v73 = vld [vmem:[#allocation6 + $0x1c] sm:$0xf]
      %v74 = vld [vmem:[#allocation6 + $0x20] sm:$0xf]
      %v75 = vld [vmem:[#allocation6 + $0x24] sm:$0xf]
      %v76 = vld [vmem:[#allocation6 + $0x28] sm:$0xf]
      %v77 = vld [vmem:[#allocation6 + $0x2c] sm:$0xf]
      %v78 = vld [vmem:[#allocation6 + $0x30] sm:$0xf]
      %v79 = vld [vmem:[#allocation6 + $0x34] sm:$0xf]
      %v80 = vld [vmem:[#allocation6 + $0x38] sm:$0xf]
      %v81 = vld [vmem:[#allocation6 + $0x3c] sm:$0xf]
      %v82 = vld [vmem:[#allocation6 + $0x40] sm:$0xf]
      %v83 = vld [vmem:[#allocation6 + $0x44] sm:$0xf]
      %v84 = vld [vmem:[#allocation6 + $0x48] sm:$0xf]
      %v85 = vld [vmem:[#allocation6 + $0x4c] sm:$0xf]
      %v86 = vld [vmem:[#allocation6 + $0x50] sm:$0xf]
      %v87 = vld [vmem:[#allocation6 + $0x54] sm:$0xf]
      %v88 = vld [vmem:[#allocation6 + $0x58] sm:$0xf]
      %v89 = vld [vmem:[#allocation6 + $0x5c] sm:$0xf]
      %v90 = vld [vmem:[#allocation6 + $0x60] sm:$0xf]
      %v91 = vld [vmem:[#allocation6 + $0x64] sm:$0xf]
      %v92 = vld [vmem:[#allocation6 + $0x68] sm:$0xf]
      %v93 = vld [vmem:[#allocation6 + $0x6c] sm:$0xf]
      %v94 = vld [vmem:[#allocation6 + $0x70] sm:$0xf]
      %v95 = vld [vmem:[#allocation6 + $0x74] sm:$0xf]
      %v96 = vld [vmem:[#allocation6 + $0x78] sm:$0xf]
      %v97 = vld [vmem:[#allocation6 + $0x7c] sm:$0xf]
      %v98 = vld [vmem:[%s2] sm:$0x1]
      %v100 = vlaneseq
      %v101 = vshrl.u32 %v100, 7
      %v102 = vsub.s32 0, %v101
      %v103 = vrot.slane %v98, %v102
      %v106 = vunpack.c.l.b16 %v65
      %v107 = vunpack.c.h.b16 %v65
      %v108 = vpack.c.b16 %v106, %v106
      %v109 = vpack.c.b16 %v107, %v107
      %v144 = vunpack.c.l.b16 %v66
      %v145 = vunpack.c.l.b16 %v67
      %v146 = vunpack.c.l.b16 %v68
      %v147 = vunpack.c.l.b16 %v69
      %v148 = vunpack.c.l.b16 %v70
      %v149 = vunpack.c.l.b16 %v71
      %v150 = vunpack.c.l.b16 %v72
      %v151 = vunpack.c.l.b16 %v73
      %v152 = vunpack.c.l.b16 %v74
      %v153 = vunpack.c.l.b16 %v75
      %v154 = vunpack.c.l.b16 %v76
      %v155 = vunpack.c.l.b16 %v77
      %v156 = vunpack.c.l.b16 %v78
      %v157 = vunpack.c.l.b16 %v79
      %v158 = vunpack.c.l.b16 %v80
      %v159 = vunpack.c.l.b16 %v81
      %v160 = vunpack.c.l.b16 %v82
      %v161 = vunpack.c.l.b16 %v83
      %v162 = vunpack.c.l.b16 %v84
      %v163 = vunpack.c.l.b16 %v85
      %v164 = vunpack.c.l.b16 %v86
      %v165 = vunpack.c.l.b16 %v87
      %v166 = vunpack.c.l.b16 %v88
      %v167 = vunpack.c.l.b16 %v89
      %v168 = vunpack.c.l.b16 %v90
      %v169 = vunpack.c.l.b16 %v91
      %v170 = vunpack.c.l.b16 %v92
      %v171 = vunpack.c.l.b16 %v93
      %v172 = vunpack.c.l.b16 %v94
      %v173 = vunpack.c.l.b16 %v95
      %v174 = vunpack.c.l.b16 %v96
      %v175 = vunpack.c.l.b16 %v97
      %v176 = vpack.c.b16 %v145, %v144
      %v177 = vpack.c.b16 %v147, %v146
      %v178 = vpack.c.b16 %v149, %v148
      %v179 = vpack.c.b16 %v151, %v150
      %v180 = vpack.c.b16 %v153, %v152
      %v181 = vpack.c.b16 %v155, %v154
      %v182 = vpack.c.b16 %v157, %v156
      %v183 = vpack.c.b16 %v159, %v158
      %v184 = vpack.c.b16 %v161, %v160
      %v185 = vpack.c.b16 %v163, %v162
      %v186 = vpack.c.b16 %v165, %v164
      %v187 = vpack.c.b16 %v167, %v166
      %v188 = vpack.c.b16 %v169, %v168
      %v189 = vpack.c.b16 %v171, %v170
      %v190 = vpack.c.b16 %v173, %v172
      %v191 = vpack.c.b16 %v175, %v174
      %208 = vmatprep.subr.bf16.mxu0 0
      %209 = vmatpush1.bf16.msra.mxu0 %v183
      %210 = vmatprep.subr.bf16.mxu0 0
      %211 = vmatpush1.bf16.msra.mxu0 %v182
      %212 = vmatprep.subr.bf16.mxu0 0
      %213 = vmatpush1.bf16.msra.mxu0 %v181
      %214 = vmatprep.subr.bf16.mxu0 0
      %215 = vmatpush1.bf16.msra.mxu0 %v180
      %216 = vmatprep.subr.bf16.mxu0 0
      %217 = vmatpush1.bf16.msra.mxu0 %v179
      %218 = vmatprep.subr.bf16.mxu0 0
      %219 = vmatpush1.bf16.msra.mxu0 %v178
      %220 = vmatprep.subr.bf16.mxu0 0
      %221 = vmatpush1.bf16.msra.mxu0 %v177
      %222 = vmatprep.subr.bf16.mxu0 0
      %223 = vmatpush1.bf16.msra.mxu0 %v176
      %224 = vmatprep.subr.bf16.mxu0 0
      %225 = vmatpush2.bf16.msra.mxu0 %v191
      %226 = vmatprep.subr.bf16.mxu0 0
      %227 = vmatpush2.bf16.msra.mxu0 %v190
      %228 = vmatprep.subr.bf16.mxu0 0
      %229 = vmatpush2.bf16.msra.mxu0 %v189
      %230 = vmatprep.subr.bf16.mxu0 0
      %231 = vmatpush2.bf16.msra.mxu0 %v188
      %232 = vmatprep.subr.bf16.mxu0 0
      %233 = vmatpush2.bf16.msra.mxu0 %v187
      %234 = vmatprep.subr.bf16.mxu0 0
      %235 = vmatpush2.bf16.msra.mxu0 %v186
      %236 = vmatprep.subr.bf16.mxu0 0
      %237 = vmatpush2.bf16.msra.mxu0 %v185
      %238 = vmatprep.subr.bf16.mxu0 0
      %239 = vmatpush2.bf16.msra.mxu0 %v184
      %240 = vmatprep.mubr.bf16.mxu0 %v109
      %241 = vmatmul.mubr.bf16.gmra.mxu0 %v108
      %v242 = vpop.f32.mrf.mxu0
      %v243 = vadd.f32 %v103, %v242
      %v244 = vpop.f32.mrf.mxu0
      %v245 = vpop.f32.mrf.mxu0
      %v246 = vpop.f32.mrf.mxu0
      %247 = vdwg.mxu0
      %v248 = vmax.f32 %v243, 0.0
      %v249 = vpack.c.bf16 %v248, %v248
      %250 = vst [vmem:[#allocation2] sm:$0xf] %v249
    $region37: #{tpu_custom_call.1} parent=1 // pred_fallthru
      _
    %v251 = vld [vmem:[#allocation2] sm:$0xf]
    %v252 = vld [vmem:[#allocation8] sm:$0xf]
    %v253 = vld [vmem:[#allocation8 + $0x4] sm:$0xf]
    %v254 = vld [vmem:[#allocation8 + $0x8] sm:$0xf]
    %v255 = vld [vmem:[#allocation8 + $0xc] sm:$0xf]
    %v256 = vld [vmem:[#allocation8 + $0x10] sm:$0xf]
    %v257 = vld [vmem:[#allocation8 + $0x14] sm:$0xf]
    %v258 = vld [vmem:[#allocation8 + $0x18] sm:$0xf]
    %v259 = vld [vmem:[#allocation8 + $0x1c] sm:$0xf]
    %v260 = vld [vmem:[#allocation8 + $0x20] sm:$0xf]
    %v261 = vld [vmem:[#allocation8 + $0x24] sm:$0xf]
    %v262 = vld [vmem:[#allocation8 + $0x28] sm:$0xf]
    %v263 = vld [vmem:[#allocation8 + $0x2c] sm:$0xf]
    %v264 = vld [vmem:[#allocation8 + $0x30] sm:$0xf]
    %v265 = vld [vmem:[#allocation8 + $0x34] sm:$0xf]
    %v266 = vld [vmem:[#allocation8 + $0x38] sm:$0xf]
    %v267 = vld [vmem:[#allocation8 + $0x3c] sm:$0xf]
    %v268 = vld [vmem:[%s4] sm:$0x1]
    %v270 = vlaneseq
    %v271 = vshrl.u32 %v270, 7
    %v272 = vsub.s32 0, %v271
    %v273 = vrot.slane %v268, %v272
    %v291 = vunpack.c.l.b16 %v252
    %v292 = vunpack.c.l.b16 %v253
    %v293 = vunpack.c.l.b16 %v254
    %v294 = vunpack.c.l.b16 %v255
    %v295 = vunpack.c.l.b16 %v256
    %v296 = vunpack.c.l.b16 %v257
    %v297 = vunpack.c.l.b16 %v258
    %v298 = vunpack.c.l.b16 %v259
    %v299 = vunpack.c.l.b16 %v260
    %v300 = vunpack.c.l.b16 %v261
    %v301 = vunpack.c.l.b16 %v262
    %v302 = vunpack.c.l.b16 %v263
    %v303 = vunpack.c.l.b16 %v264
    %v304 = vunpack.c.l.b16 %v265
    %v305 = vunpack.c.l.b16 %v266
    %v306 = vunpack.c.l.b16 %v267
    %v307 = vpack.c.b16 %v292, %v291
    %v308 = vpack.c.b16 %v294, %v293
    %v309 = vpack.c.b16 %v296, %v295
    %v310 = vpack.c.b16 %v298, %v297
    %v311 = vpack.c.b16 %v300, %v299
    %v312 = vpack.c.b16 %v302, %v301
    %v313 = vpack.c.b16 %v304, %v303
    %v314 = vpack.c.b16 %v306, %v305
    %323 = vmatprep.subr.bf16.mxu0 0
    %324 = vmatpush1.bf16.msra.mxu0 %v314
    %325 = vmatprep.subr.bf16.mxu0 0
    %326 = vmatpush1.bf16.msra.mxu0 %v313
    %327 = vmatprep.subr.bf16.mxu0 0
    %328 = vmatpush1.bf16.msra.mxu0 %v312
    %329 = vmatprep.subr.bf16.mxu0 0
    %330 = vmatpush1.bf16.msra.mxu0 %v311
    %331 = vmatprep.subr.bf16.mxu0 0
    %332 = vmatpush1.bf16.msra.mxu0 %v310
    %333 = vmatprep.subr.bf16.mxu0 0
    %334 = vmatpush1.bf16.msra.mxu0 %v309
    %335 = vmatprep.subr.bf16.mxu0 0
    %336 = vmatpush1.bf16.msra.mxu0 %v308
    %337 = vmatprep.subr.bf16.mxu0 0
    %338 = vmatpush1.bf16.msra.mxu0 %v307
    %339 = vmatprep.subr.bf16.mxu0 0
    %340 = vmatpush2.bf16.msra.mxu0 0
    %341 = vmatprep.subr.bf16.mxu0 0
    %342 = vmatpush2.bf16.msra.mxu0 0
    %343 = vmatprep.subr.bf16.mxu0 0
    %344 = vmatpush2.bf16.msra.mxu0 0
    %345 = vmatprep.subr.bf16.mxu0 0
    %346 = vmatpush2.bf16.msra.mxu0 0
    %347 = vmatprep.subr.bf16.mxu0 0
    %348 = vmatpush2.bf16.msra.mxu0 0
    %349 = vmatprep.subr.bf16.mxu0 0
    %350 = vmatpush2.bf16.msra.mxu0 0
    %351 = vmatprep.subr.bf16.mxu0 0
    %352 = vmatpush2.bf16.msra.mxu0 0
    %353 = vmatprep.subr.bf16.mxu0 0
    %354 = vmatpush2.bf16.msra.mxu0 0
    %355 = vmatprep.mubr.bf16.mxu0 0
    %356 = vmatmul.mubr.bf16.gmra.mxu0 %v251
    %v357 = vpop.f32.mrf.mxu0
    %v358 = vadd.f32 %v273, %v357
    %v359 = vpop.f32.mrf.mxu0
    %v360 = vpop.f32.mrf.mxu0
    %v361 = vpop.f32.mrf.mxu0
    %362 = vdwg.mxu0
    %363 = vst [vmem:[#allocation9] sm:$0xff] %v358
    // Predicated region
    $region38: #{tpu_custom_call.1} parent=1 // pred_check
      _
    $region39: #{tpu_custom_call.1} parent=1 // pred_check_branch
      %365 = sbr.rel (0) target = $region41
    $region40: #{tpu_custom_call.1} parent=1 // pred_region
      %s367 = ssub.s32 128, 128
      %368 = vsyncadd [#allocation5], %s367
      %s370 = sshll.u32 [#allocation9], 4
      %s371 = int_to_ptr.vmem [resolvable:$true] %s370
      %373 = dma.vmem_to_hbm [thread:$0]  %s371, 128, %s5, [#allocation5]
    $region41: #{tpu_custom_call.1} parent=1 // pred_fallthru
      _
    // Predicated region
    $region42: #{tpu_custom_call.1} parent=1 // pred_check
      _
    $region43: #{tpu_custom_call.1} parent=1 // pred_check_branch
      %375 = sbr.rel (0) target = $region45
    $region44: #{tpu_custom_call.1} parent=1 // pred_region
      %376 = dma.done [#allocation5], 128
    $region45: #{tpu_custom_call.1} parent=1 // pred_fallthru
      _
    %377 = vsyncpa [#allocation4], 1
    %378 = vsyncpa [#allocation7], 1
    %379 = vsyncpa [#allocation5], 1

</llo_original>
